<compile_context>
chip_gen: v7x
topology: tpu7x:2x2x1
jax: 0.10.0
libtpu: 0.0.40
codegen_flags: <defaults>
</compile_context>

<pallas_src>
import numpy as np
import jax
import jax.numpy as jnp
from jax.experimental import pallas as pl
from jax.experimental.pallas import tpu as pltpu


def to_2tuple(x):
    if isinstance(x, (list, tuple)):
        if len(x) == 1:
            return (x[0], x[0])
        elif len(x) >= 2:
            return (x[0], x[1])
        raise ValueError("Input sequence is empty")
    return (x, x)


def _round_up(x, m):
    return ((x + m - 1) // m) * m


def _cdiv(a, b):
    return (a + b - 1) // b


def _patch_embed_kernel(p_ref, w_ref, b_ref, o_ref):
    # p_ref: (TM, K) im2col row tile; w_ref: (K, Np); b_ref: (1, Np); o_ref: (TM, Np)
    # MXU default precision (same path the pure-JAX reference dot uses).  Pass
    # precision=lax.Precision.HIGHEST here if bit-closeness to PyTorch's f32
    # Conv2d is required; the kernel is HBM-bound so the extra passes are cheap.
    acc = jnp.dot(p_ref[...], w_ref[...], preferred_element_type=jnp.float32)
    o_ref[...] = (acc + b_ref[...]).astype(o_ref.dtype)


class AdaptivePatchEmbed:
    """JAX/Pallas port of the PyTorch AdaptivePatchEmbed (norm_layer=None)."""

    def __init__(self, patch_size=4, in_chans=3, embed_dim=96, key=None):
        ph, pw = to_2tuple(patch_size)
        self.patch_size = (ph, pw)
        self.in_chans = in_chans
        self.embed_dim = embed_dim
        if key is None:
            key = jax.random.PRNGKey(0)
        k_w, k_b = jax.random.split(key)
        # nn.Conv2d default init: U(-sqrt(k), sqrt(k)), k = 1 / (in_chans*ph*pw)
        fan_in = in_chans * ph * pw
        bound = 1.0 / np.sqrt(fan_in)
        self.weight = jax.random.uniform(
            k_w, (embed_dim, in_chans, ph, pw), jnp.float32, -bound, bound)
        self.bias = jax.random.uniform(
            k_b, (embed_dim,), jnp.float32, -bound, bound)
        self.norm = None  # norm_layer=None default

        self.K = fan_in
        self.N = embed_dim
        # Lane-pad embed_dim to a multiple of 128 only when needed (unmasked,
        # lane-dense output stores); skip pad + post-kernel slice when aligned.
        self.Np = _round_up(embed_dim, 128)
        w2d = self.weight.reshape(embed_dim, self.K).T                # (K, N)
        if self.Np != embed_dim:
            self.w2d = jnp.pad(w2d, ((0, 0), (0, self.Np - embed_dim)))
            self.b2d = jnp.pad(self.bias.reshape(1, embed_dim),
                               ((0, 0), (0, self.Np - embed_dim)))
        else:
            self.w2d = w2d
            self.b2d = self.bias.reshape(1, embed_dim)

        self.patches_resolution = None
        self.num_patches = None

        # One XLA program per (image geometry, bbox geometry); static bbox
        # bounds keep the whole crop->im2col->matmul path shape-static inside
        # a single jit so producer ops fuse instead of running eagerly.
        self._fwd = jax.jit(self._forward_impl, static_argnums=(3, 4, 5, 6))

    @staticmethod
    def _bbox_bounds(H, W, coord):
        # Reproduces bbox_cut's spatial bounds (host-side Python int() casts,
        # same restriction as the PyTorch original: coord must be concrete).
        cx, cy, bw, bh = [float(c) for c in coord]
        x1 = int(max(0, (cx - bw / 2) * W))
        y1 = int(max(0, (cy - bh / 2) * H))
        x2 = int(min(W, (cx + bw / 2) * W))
        y2 = int(min(H, (cy + bh / 2) * H))
        return y1, y2, x1, x2

    @staticmethod
    def _choose_tm(M, K, Np, resident_bytes):
        # Row tile as large as a ~24 MiB budget allows (amortizes the ~0.35us
        # per-grid-step overhead), rounded to 256 rows (MXU row group), capped
        # at 2048.  For larger M keep ~>=4 roughly balanced grid steps so
        # v7x's two TensorCores share the "parallel" axis evenly.
        budget = 24 * 1024 * 1024 - resident_bytes
        per_row = 2 * 4 * (K + Np)            # double-buffered in + out rows, f32
        tm_vmem = max(256, (budget // per_row) // 256 * 256)
        if M > 4 * 256:
            tm_m = _round_up(_cdiv(M, 4), 256)
        else:
            tm_m = _round_up(M, 256)
        return int(min(2048, tm_vmem, tm_m))

    def _forward_impl(self, x, w2d, b2d, y1, y2, x1, x2):
        B, C, H, W = x.shape
        ph, pw = self.patch_size
        K, N, Np = self.K, self.N, self.Np
        Ho, Wo = (y2 - y1) // ph, (x2 - x1) // pw
        M = B * Ho * Wo

        # Crop (stride==kernel conv floors the leftover) + im2col.  Under jit
        # the slice/reshape/transpose fuse into a single producer pass.
        crop = jax.lax.slice(x, (0, 0, y1, x1), (B, C, y1 + Ho * ph, x1 + Wo * pw))
        patches = (crop.reshape(B, C, Ho, ph, Wo, pw)
                   .transpose(0, 2, 4, 1, 3, 5)
                   .reshape(M, K))
        # TODO(synk): fully fusing the im2col into the Pallas kernel (scalar-
        # prefetched bbox + in-kernel (C,ph)x(Wo,pw) relayout) would save one
        # more HBM round trip, but needs Mosaic relayouts on tiny, unaligned
        # minor dims; the rearrangement is left to XLA's transpose here.

        # Resident weight/bias: constant index_map => never re-fetched.  Single-
        # buffer them when large enough for the VMEM saving to matter.
        w_bytes = (K * Np + Np) * 4
        if w_bytes >= (1 << 20):
            w_spec = pl.BlockSpec((K, Np), lambda i: (0, 0),
                                  pipeline_mode=pl.Buffered(1))
            b_spec = pl.BlockSpec((1, Np), lambda i: (0, 0),
                                  pipeline_mode=pl.Buffered(1))
            resident = w_bytes
        else:
            w_spec = pl.BlockSpec((K, Np), lambda i: (0, 0))
            b_spec = pl.BlockSpec((1, Np), lambda i: (0, 0))
            resident = 2 * w_bytes

        TM = self._choose_tm(M, K, Np, resident)
        grid = (_cdiv(M, TM),)

        # Explicit VMEM limit: big tiles need more than v5e's 16 MiB default
        # scoped limit but must stay well inside v7x's 64 MiB physical VMEM.
        tile_bytes = 2 * TM * (K + Np) * 4 + resident
        vmem_limit = int(min(max(tile_bytes * 5 // 4, 16 << 20), 48 << 20))

        # Ragged grid: M need not be a multiple of TM.  Pallas pads the last
        # input block on read and clips the last output block on write, so no
        # row padding and no post-kernel row slice are needed.
        out_p = pl.pallas_call(
            _patch_embed_kernel,
            out_shape=jax.ShapeDtypeStruct((M, Np), jnp.float32),
            grid=grid,
            in_specs=[
                pl.BlockSpec((TM, K), lambda i: (i, 0)),   # row tile of patches
                w_spec,                                    # resident weight
                b_spec,                                    # resident bias
            ],
            out_specs=pl.BlockSpec((TM, Np), lambda i: (i, 0)),
            compiler_params=pltpu.CompilerParams(
                dimension_semantics=("parallel",),
                vmem_limit_bytes=vmem_limit),
        )(patches, w2d, b2d)

        out = out_p if Np == N else out_p[:, :N]   # drop zero pad lanes only
        # == proj(crop).flatten(2).transpose(1, 2)
        return out.reshape(B, Ho * Wo, N)

    def __call__(self, x, coord):
        # TODO(synk): the original forward's `self.img_size = resize_frames(size_cut)`
        # (interpolating a size tuple) is a bug with no effect on the returned
        # value; only the crop -> proj -> flatten(2).transpose(1,2) path is
        # implemented here.
        B, C, H, W = x.shape
        ph, pw = self.patch_size
        y1, y2, x1, x2 = self._bbox_bounds(H, W, coord)
        Ho, Wo = (y2 - y1) // ph, (x2 - x1) // pw
        self.patches_resolution = [Ho, Wo]
        self.num_patches = Ho * Wo
        if Ho <= 0 or Wo <= 0:          # degenerate bbox -> no patches
            return jnp.zeros((B, 0, self.embed_dim), jnp.float32)
        return self._fwd(x, self.w2d, self.b2d, y1, y2, x1, x2)


if __name__ == "__main__":
    key = jax.random.PRNGKey(0)
    k_x, k_params = jax.random.split(key)

    # Small shapes consistent with the module's forward: NCHW input + [cx,cy,w,h] bbox.
    B, C, H, W = 2, 4, 16, 16
    patch_size = 4
    embed_dim = 32

    x = jax.random.normal(k_x, (B, C, H, W), jnp.float32)
    coord = [0.5, 0.5, 0.75, 0.75]  # -> 12x12 crop -> 3x3 = 9 patches per image

    model = AdaptivePatchEmbed(patch_size=patch_size, in_chans=C,
                               embed_dim=embed_dim, key=k_params)
    out = model(x, coord)
    out = jax.block_until_ready(out)

    # Pure-JAX reference (same im2col + matmul semantics as a stride=kernel Conv2d).
    y1, y2, x1, x2 = model._bbox_bounds(H, W, coord)
    ph, pw = model.patch_size
    Ho, Wo = (y2 - y1) // ph, (x2 - x1) // pw
    crop = x[:, :, y1:y1 + Ho * ph, x1:x1 + Wo * pw]
    patches = (crop.reshape(B, C, Ho, ph, Wo, pw)
               .transpose(0, 2, 4, 1, 3, 5)
               .reshape(B * Ho * Wo, C * ph * pw))
    ref = patches @ model.weight.reshape(embed_dim, -1).T + model.bias
    ref = ref.reshape(B, Ho * Wo, embed_dim)

    assert out.shape == (B, Ho * Wo, embed_dim), out.shape
    np.testing.assert_allclose(np.asarray(out), np.asarray(ref),
                               rtol=1e-5, atol=1e-5)
    print("KERNEL_OK")
</pallas_src>

<mosaic_0001>
module attributes {stable_mosaic.version = 11 : i64} {
  func.func @_patch_embed_kernel(%arg0: i32, %arg1: memref<256x64xf32, #tpu.memory_space<vmem>>, %arg2: memref<64x128xf32, #tpu.memory_space<vmem>>, %arg3: memref<1x128xf32, #tpu.memory_space<vmem>>, %arg4: memref<256x128xf32, #tpu.memory_space<vmem>>) attributes {dimension_semantics = [#tpu.dimension_semantics<parallel>], iteration_bounds = array<i64: 1>, scalar_prefetch = 0 : i64, scratch_operands = 0 : i64, tpu.core_type = #tpu.core_type<tc>, window_params = [{transform_indices = @transform_0, window_bounds = array<i64: 256, 64>}, {pipeline_mode = #tpu.pipeline_mode<synchronous>, transform_indices = @transform_1, window_bounds = array<i64: 64, 128>}, {pipeline_mode = #tpu.pipeline_mode<synchronous>, transform_indices = @transform_2, window_bounds = array<i64: 1, 128>}, {transform_indices = @transform_3, window_bounds = array<i64: 256, 128>}]} {
    %c0 = arith.constant 0 : index
    %c0_0 = arith.constant 0 : index
    %0 = vector.load %arg1[%c0, %c0_0] : memref<256x64xf32, #tpu.memory_space<vmem>>, vector<256x64xf32>
    %c0_1 = arith.constant 0 : index
    %c0_2 = arith.constant 0 : index
    %1 = vector.load %arg2[%c0_1, %c0_2] : memref<64x128xf32, #tpu.memory_space<vmem>>, vector<64x128xf32>
    %cst = arith.constant dense<0.000000e+00> : vector<256x128xf32>
    %2 = tpu.matmul %0, %1, %cst {dimension_numbers = #tpu.dot_dimension_numbers<[1], [0], [0], [1], [0, 0, 1, 1], [], []>} : vector<256x64xf32>, vector<64x128xf32>, vector<256x128xf32> -> vector<256x128xf32>
    %c0_3 = arith.constant 0 : index
    %c0_4 = arith.constant 0 : index
    %3 = vector.load %arg3[%c0_3, %c0_4] : memref<1x128xf32, #tpu.memory_space<vmem>>, vector<1x128xf32>
    %4 = vector.broadcast %3 : vector<1x128xf32> to vector<256x128xf32>
    %5 = arith.addf %2, %4 : vector<256x128xf32>
    %c0_5 = arith.constant 0 : index
    %c0_6 = arith.constant 0 : index
    %6 = vector.load %arg4[%c0_5, %c0_6] : memref<256x128xf32, #tpu.memory_space<vmem>>, vector<256x128xf32>
    tpu.vector_store %arg4[%c0_5, %c0_6], %5 {strides = array<i32>} : memref<256x128xf32, #tpu.memory_space<vmem>>, vector<256x128xf32>,
    return
  }
  func.func @transform_0(%arg0: i32) -> (i32, i32) {
    %c0_i32 = arith.constant 0 : i32
    %c0_i32_0 = arith.constant 0 : i32
    return %arg0, %c0_i32 : i32, i32
  }
  func.func @transform_1(%arg0: i32) -> (i32, i32) {
    %c0_i32 = arith.constant 0 : i32
    %c0_i32_0 = arith.constant 0 : i32
    %c0_i32_1 = arith.constant 0 : i32
    return %c0_i32, %c0_i32_0 : i32, i32
  }
  func.func @transform_2(%arg0: i32) -> (i32, i32) {
    %c0_i32 = arith.constant 0 : i32
    %c0_i32_0 = arith.constant 0 : i32
    %c0_i32_1 = arith.constant 0 : i32
    return %c0_i32, %c0_i32_0 : i32, i32
  }
  func.func @transform_3(%arg0: i32) -> (i32, i32) {
    %c0_i32 = arith.constant 0 : i32
    %c0_i32_0 = arith.constant 0 : i32
    return %arg0, %c0_i32 : i32, i32
  }
}

</mosaic_0001>

<llo_original>
// kernel: _forward_impl.1
$region0: #{_forward_impl.1}
  #allocation0 [shape = 'u32[]', space=smem, size = 0x4, offset = 0x4, fixed_abs, tag = 'smem constant byte address 0x4 - core index']
  #allocation1 [shape = 'u32[144,128]{1,0:T(1,128)}', space=vmem, size = 0x12000, scoped, tag = 'internal scratch']
  %s0 = inlined_call_operand.vmem [shape: f32[18,64], index: 0, kind: input, shape index: {}]
  %s1 = inlined_call_operand.vmem [shape: f32[64,128], index: 1, kind: input, shape index: {}]
  %s2 = inlined_call_operand.vmem [shape: f32[1,128], index: 2, kind: input, shape index: {}]
  %s3 = inlined_call_operand.vmem [shape: f32[18,128], index: 3, kind: output, shape index: {}]
  %s4 = sld [smem:[#allocation0]]
  $region56: #{_forward_impl.1} parent=0
    _
  %s6 = ssub.s32 1, %s4
  %s7 = scalar_select 0, %s6, %s4
  $region1: #{_forward_impl.1} parent=0
    #allocation2 [shape = 'u8[131072]{0}', space=vmem, size = 0x20000, scoped, tag = 'output window, operand 0, single buffered']
    // Predicated region
    $region2: #{_forward_impl.1} parent=1 // pred_check
      _
    $region3: #{_forward_impl.1} parent=1 // pred_check_branch
      %9 = sbr.rel (0) target = $region5
    $region4: #{_forward_impl.1} parent=1 // pred_region
      _
    $region5: #{_forward_impl.1} parent=1 // pred_fallthru
      _
    // Predicated region
    $region6: #{_forward_impl.1} parent=1 // pred_check
      _
    $region7: #{_forward_impl.1} parent=1 // pred_check_branch
      %11 = sbr.rel (0) target = $region9
    $region8: #{_forward_impl.1} parent=1 // pred_region
      _
    $region9: #{_forward_impl.1} parent=1 // pred_fallthru
      _
    // Predicated region
    $region10: #{_forward_impl.1} parent=1 // pred_check
      _
    $region11: #{_forward_impl.1} parent=1 // pred_check_branch
      %13 = sbr.rel (0) target = $region13
    $region12: #{_forward_impl.1} parent=1 // pred_region
      _
    $region13: #{_forward_impl.1} parent=1 // pred_fallthru
      _
    %v14 = vld [vmem:[%s0] sm:$0xff]
    %v15 = vld [vmem:[%s0 + $0x8] sm:$0xff]
    %v16 = vld [vmem:[%s0 + $0x10] sm:$0xff]
    %v17 = vld [vmem:[%s0 + $0x18] sm:$0xff]
    %v18 = vld [vmem:[%s0 + $0x20] sm:$0xff]
    %v19 = vld [vmem:[%s0 + $0x28] sm:$0xff]
    %v20 = vld [vmem:[%s0 + $0x30] sm:$0xff]
    %v21 = vld [vmem:[%s0 + $0x38] sm:$0xff]
    %v22 = vld [vmem:[%s0 + $0x40] sm:$0xff]
    %v23 = vld [vmem:[%s0 + $0x48] sm:$0xff]
    %v24 = vld [vmem:[%s0 + $0x50] sm:$0xff]
    %v25 = vld [vmem:[%s0 + $0x58] sm:$0xff]
    %v26 = vld [vmem:[%s0 + $0x60] sm:$0xff]
    %v27 = vld [vmem:[%s0 + $0x68] sm:$0xff]
    %v28 = vld [vmem:[%s0 + $0x70] sm:$0xff]
    %v29 = vld [vmem:[%s0 + $0x78] sm:$0xff]
    %v30 = vld [vmem:[%s0 + $0x80] sm:$0xff]
    %v31 = vld [vmem:[%s0 + $0x88] sm:$0xff]
    %v32 = vld [vmem:[%s0 + $0x90] sm:$0xff]
    %v33 = vld [vmem:[%s0 + $0x98] sm:$0xff]
    %v34 = vld [vmem:[%s0 + $0xa0] sm:$0xff]
    %v35 = vld [vmem:[%s0 + $0xa8] sm:$0xff]
    %v36 = vld [vmem:[%s0 + $0xb0] sm:$0xff]
    %v37 = vld [vmem:[%s0 + $0xb8] sm:$0xff]
    %v38 = vld [vmem:[%s0 + $0xc0] sm:$0xff]
    %v39 = vld [vmem:[%s0 + $0xc8] sm:$0xff]
    %v40 = vld [vmem:[%s0 + $0xd0] sm:$0xff]
    %v41 = vld [vmem:[%s0 + $0xd8] sm:$0xff]
    %v42 = vld [vmem:[%s0 + $0xe0] sm:$0xff]
    %v43 = vld [vmem:[%s0 + $0xe8] sm:$0xff]
    %v44 = vld [vmem:[%s0 + $0xf0] sm:$0xff]
    %v45 = vld [vmem:[%s0 + $0xf8] sm:$0xff]
    %v46 = vld [vmem:[%s1] sm:$0xff]
    %v47 = vld [vmem:[%s1 + $0x8] sm:$0xff]
    %v48 = vld [vmem:[%s1 + $0x10] sm:$0xff]
    %v49 = vld [vmem:[%s1 + $0x18] sm:$0xff]
    %v50 = vld [vmem:[%s1 + $0x20] sm:$0xff]
    %v51 = vld [vmem:[%s1 + $0x28] sm:$0xff]
    %v52 = vld [vmem:[%s1 + $0x30] sm:$0xff]
    %v53 = vld [vmem:[%s1 + $0x38] sm:$0xff]
    %v54 = vld [vmem:[%s2] sm:$0x1]
    %v56 = vlaneseq
    %v57 = vshrl.u32 %v56, 7
    %v58 = vsub.s32 0, %v57
    %v59 = vrot.slane %v54, %v58
    %vm61 = vcmask 523264
    %v63 = vsel %vm61, %v14, 0
    %v66 = vsel %vm61, %v15, 0
    %v69 = vsel %vm61, %v16, 0
    %v72 = vsel %vm61, %v17, 0
    %v75 = vsel %vm61, %v18, 0
    %v78 = vsel %vm61, %v19, 0
    %v81 = vsel %vm61, %v20, 0
    %v84 = vsel %vm61, %v21, 0
    %v87 = vsel %vm61, %v22, 0
    %v90 = vsel %vm61, %v23, 0
    %v93 = vsel %vm61, %v24, 0
    %v96 = vsel %vm61, %v25, 0
    %v99 = vsel %vm61, %v26, 0
    %v102 = vsel %vm61, %v27, 0
    %v105 = vsel %vm61, %v28, 0
    %v108 = vsel %vm61, %v29, 0
    %v111 = vsel %vm61, %v30, 0
    %v114 = vsel %vm61, %v31, 0
    %v117 = vsel %vm61, %v32, 0
    %v120 = vsel %vm61, %v33, 0
    %v123 = vsel %vm61, %v34, 0
    %v126 = vsel %vm61, %v35, 0
    %v129 = vsel %vm61, %v36, 0
    %v132 = vsel %vm61, %v37, 0
    %v135 = vsel %vm61, %v38, 0
    %v138 = vsel %vm61, %v39, 0
    %v141 = vsel %vm61, %v40, 0
    %v144 = vsel %vm61, %v41, 0
    %v147 = vsel %vm61, %v42, 0
    %v150 = vsel %vm61, %v43, 0
    %v153 = vsel %vm61, %v44, 0
    %v156 = vsel %vm61, %v45, 0
    %158 = vmatprep.subr.mxu0 0.0
    %159 = vmatpush1.msra.mxu0 %v46
    %160 = vmatprep.subr.mxu0 0.0
    %161 = vmatpush1.msra.mxu0 %v47
    %162 = vmatprep.subr.mxu0 0.0
    %163 = vmatpush1.msra.mxu0 %v48
    %164 = vmatprep.subr.mxu0 0.0
    %165 = vmatpush1.msra.mxu0 %v49
    %166 = vmatprep.subr.mxu0 0.0
    %167 = vmatpush1.msra.mxu0 %v50
    %168 = vmatprep.subr.mxu0 0.0
    %169 = vmatpush1.msra.mxu0 %v51
    %170 = vmatprep.subr.mxu0 0.0
    %171 = vmatpush1.msra.mxu0 %v52
    %172 = vmatprep.subr.mxu0 0.0
    %173 = vmatpush1.msra.mxu0 %v53
    %174 = vmatprep.subr.mxu0 0.0
    %175 = vmatpush1.msra.mxu0 0.0
    %176 = vmatprep.subr.mxu0 0.0
    %177 = vmatpush1.msra.mxu0 0.0
    %178 = vmatprep.subr.mxu0 0.0
    %179 = vmatpush1.msra.mxu0 0.0
    %180 = vmatprep.subr.mxu0 0.0
    %181 = vmatpush1.msra.mxu0 0.0
    %182 = vmatprep.subr.mxu0 0.0
    %183 = vmatpush1.msra.mxu0 0.0
    %184 = vmatprep.subr.mxu0 0.0
    %185 = vmatpush1.msra.mxu0 0.0
    %186 = vmatprep.subr.mxu0 0.0
    %187 = vmatpush1.msra.mxu0 0.0
    %188 = vmatprep.subr.mxu0 0.0
    %189 = vmatpush1.msra.mxu0 0.0
    %190 = vmatprep.subr.mxu0 0.0
    %191 = vmatpush1.msra.mxu0 0.0
    %192 = vmatprep.subr.mxu0 0.0
    %193 = vmatpush1.msra.mxu0 0.0
    %194 = vmatprep.subr.mxu0 0.0
    %195 = vmatpush1.msra.mxu0 0.0
    %196 = vmatprep.subr.mxu0 0.0
    %197 = vmatpush1.msra.mxu0 0.0
    %198 = vmatprep.subr.mxu0 0.0
    %199 = vmatpush1.msra.mxu0 0.0
    %200 = vmatprep.subr.mxu0 0.0
    %201 = vmatpush1.msra.mxu0 0.0
    %202 = vmatprep.subr.mxu0 0.0
    %203 = vmatpush1.msra.mxu0 0.0
    %204 = vmatprep.subr.mxu0 0.0
    %205 = vmatpush1.msra.mxu0 0.0
    %206 = vmatprep.subr.mxu0 0.0
    %207 = vmatpush1.msra.mxu0 0.0
    %208 = vmatprep.subr.mxu0 0.0
    %209 = vmatpush1.msra.mxu0 0.0
    %210 = vmatprep.subr.mxu0 0.0
    %211 = vmatpush1.msra.mxu0 0.0
    %212 = vmatprep.subr.mxu0 0.0
    %213 = vmatpush1.msra.mxu0 0.0
    %214 = vmatprep.subr.mxu0 0.0
    %215 = vmatpush1.msra.mxu0 0.0
    %216 = vmatprep.subr.mxu0 0.0
    %217 = vmatpush1.msra.mxu0 0.0
    %218 = vmatprep.subr.mxu0 0.0
    %219 = vmatpush1.msra.mxu0 0.0
    %220 = vmatprep.subr.mxu0 0.0
    %221 = vmatpush1.msra.mxu0 0.0
    %222 = vmatprep.mubr.f32.mxu0 0.0
    %223 = vmatmul.mubr.f32.gmra.mrb[0].mxu0 %v63
    %v224 = vpop.f32.mrb[0].mxu0
    %v225 = vadd.f32 %v59, %v224
    %v226 = vpop.f32.mrb[0].mxu0
    %227 = vmatprep.mubr.f32.mxu0 0.0
    %228 = vmatmul.mubr.f32.gmra.mrb[0].mxu0 %v66
    %v229 = vpop.f32.mrb[0].mxu0
    %v230 = vadd.f32 %v59, %v229
    %v231 = vpop.f32.mrb[0].mxu0
    %232 = vmatprep.mubr.f32.mxu0 0.0
    %233 = vmatmul.mubr.f32.gmra.mrb[0].mxu0 %v69
    %v234 = vpop.f32.mrb[0].mxu0
    %v235 = vadd.f32 %v59, %v234
    %v236 = vpop.f32.mrb[0].mxu0
    %237 = vmatprep.mubr.f32.mxu0 0.0
    %238 = vmatmul.mubr.f32.gmra.mrb[0].mxu0 %v72
    %v239 = vpop.f32.mrb[0].mxu0
    %v240 = vadd.f32 %v59, %v239
    %v241 = vpop.f32.mrb[0].mxu0
    %242 = vmatprep.mubr.f32.mxu0 0.0
    %243 = vmatmul.mubr.f32.gmra.mrb[0].mxu0 %v75
    %v244 = vpop.f32.mrb[0].mxu0
    %v245 = vadd.f32 %v59, %v244
    %v246 = vpop.f32.mrb[0].mxu0
    %247 = vmatprep.mubr.f32.mxu0 0.0
    %248 = vmatmul.mubr.f32.gmra.mrb[0].mxu0 %v78
    %v249 = vpop.f32.mrb[0].mxu0
    %v250 = vadd.f32 %v59, %v249
    %v251 = vpop.f32.mrb[0].mxu0
    %252 = vmatprep.mubr.f32.mxu0 0.0
    %253 = vmatmul.mubr.f32.gmra.mrb[0].mxu0 %v81
    %v254 = vpop.f32.mrb[0].mxu0
    %v255 = vadd.f32 %v59, %v254
    %v256 = vpop.f32.mrb[0].mxu0
    %257 = vmatprep.mubr.f32.mxu0 0.0
    %258 = vmatmul.mubr.f32.gmra.mrb[0].mxu0 %v84
    %v259 = vpop.f32.mrb[0].mxu0
    %v260 = vadd.f32 %v59, %v259
    %v261 = vpop.f32.mrb[0].mxu0
    %262 = vmatprep.mubr.f32.mxu0 0.0
    %263 = vmatmul.mubr.f32.gmra.mrb[0].mxu0 %v87
    %v264 = vpop.f32.mrb[0].mxu0
    %v265 = vadd.f32 %v59, %v264
    %v266 = vpop.f32.mrb[0].mxu0
    %267 = vmatprep.mubr.f32.mxu0 0.0
    %268 = vmatmul.mubr.f32.gmra.mrb[0].mxu0 %v90
    %v269 = vpop.f32.mrb[0].mxu0
    %v270 = vadd.f32 %v59, %v269
    %v271 = vpop.f32.mrb[0].mxu0
    %272 = vmatprep.mubr.f32.mxu0 0.0
    %273 = vmatmul.mubr.f32.gmra.mrb[0].mxu0 %v93
    %v274 = vpop.f32.mrb[0].mxu0
    %v275 = vadd.f32 %v59, %v274
    %v276 = vpop.f32.mrb[0].mxu0
    %277 = vmatprep.mubr.f32.mxu0 0.0
    %278 = vmatmul.mubr.f32.gmra.mrb[0].mxu0 %v96
    %v279 = vpop.f32.mrb[0].mxu0
    %v280 = vadd.f32 %v59, %v279
    %v281 = vpop.f32.mrb[0].mxu0
    %282 = vmatprep.mubr.f32.mxu0 0.0
    %283 = vmatmul.mubr.f32.gmra.mrb[0].mxu0 %v99
    %v284 = vpop.f32.mrb[0].mxu0
    %v285 = vadd.f32 %v59, %v284
    %v286 = vpop.f32.mrb[0].mxu0
    %287 = vmatprep.mubr.f32.mxu0 0.0
    %288 = vmatmul.mubr.f32.gmra.mrb[0].mxu0 %v102
    %v289 = vpop.f32.mrb[0].mxu0
    %v290 = vadd.f32 %v59, %v289
    %v291 = vpop.f32.mrb[0].mxu0
    %292 = vmatprep.mubr.f32.mxu0 0.0
    %293 = vmatmul.mubr.f32.gmra.mrb[0].mxu0 %v105
    %v294 = vpop.f32.mrb[0].mxu0
    %v295 = vadd.f32 %v59, %v294
    %v296 = vpop.f32.mrb[0].mxu0
    %297 = vmatprep.mubr.f32.mxu0 0.0
    %298 = vmatmul.mubr.f32.gmra.mrb[0].mxu0 %v108
    %v299 = vpop.f32.mrb[0].mxu0
    %v300 = vadd.f32 %v59, %v299
    %v301 = vpop.f32.mrb[0].mxu0
    %302 = vmatprep.mubr.f32.mxu0 0.0
    %303 = vmatmul.mubr.f32.gmra.mrb[0].mxu0 %v111
    %v304 = vpop.f32.mrb[0].mxu0
    %v305 = vadd.f32 %v59, %v304
    %v306 = vpop.f32.mrb[0].mxu0
    %307 = vmatprep.mubr.f32.mxu0 0.0
    %308 = vmatmul.mubr.f32.gmra.mrb[0].mxu0 %v114
    %v309 = vpop.f32.mrb[0].mxu0
    %v310 = vadd.f32 %v59, %v309
    %v311 = vpop.f32.mrb[0].mxu0
    %312 = vmatprep.mubr.f32.mxu0 0.0
    %313 = vmatmul.mubr.f32.gmra.mrb[0].mxu0 %v117
    %v314 = vpop.f32.mrb[0].mxu0
    %v315 = vadd.f32 %v59, %v314
    %v316 = vpop.f32.mrb[0].mxu0
    %317 = vmatprep.mubr.f32.mxu0 0.0
    %318 = vmatmul.mubr.f32.gmra.mrb[0].mxu0 %v120
    %v319 = vpop.f32.mrb[0].mxu0
    %v320 = vadd.f32 %v59, %v319
    %v321 = vpop.f32.mrb[0].mxu0
    %322 = vmatprep.mubr.f32.mxu0 0.0
    %323 = vmatmul.mubr.f32.gmra.mrb[0].mxu0 %v123
    %v324 = vpop.f32.mrb[0].mxu0
    %v325 = vadd.f32 %v59, %v324
    %v326 = vpop.f32.mrb[0].mxu0
    %327 = vmatprep.mubr.f32.mxu0 0.0
    %328 = vmatmul.mubr.f32.gmra.mrb[0].mxu0 %v126
    %v329 = vpop.f32.mrb[0].mxu0
    %v330 = vadd.f32 %v59, %v329
    %v331 = vpop.f32.mrb[0].mxu0
    %332 = vmatprep.mubr.f32.mxu0 0.0
    %333 = vmatmul.mubr.f32.gmra.mrb[0].mxu0 %v129
    %v334 = vpop.f32.mrb[0].mxu0
    %v335 = vadd.f32 %v59, %v334
    %v336 = vpop.f32.mrb[0].mxu0
    %337 = vmatprep.mubr.f32.mxu0 0.0
    %338 = vmatmul.mubr.f32.gmra.mrb[0].mxu0 %v132
    %v339 = vpop.f32.mrb[0].mxu0
    %v340 = vadd.f32 %v59, %v339
    %v341 = vpop.f32.mrb[0].mxu0
    %342 = vmatprep.mubr.f32.mxu0 0.0
    %343 = vmatmul.mubr.f32.gmra.mrb[0].mxu0 %v135
    %v344 = vpop.f32.mrb[0].mxu0
    %v345 = vadd.f32 %v59, %v344
    %v346 = vpop.f32.mrb[0].mxu0
    %347 = vmatprep.mubr.f32.mxu0 0.0
    %348 = vmatmul.mubr.f32.gmra.mrb[0].mxu0 %v138
    %v349 = vpop.f32.mrb[0].mxu0
    %v350 = vadd.f32 %v59, %v349
    %v351 = vpop.f32.mrb[0].mxu0
    %352 = vmatprep.mubr.f32.mxu0 0.0
    %353 = vmatmul.mubr.f32.gmra.mrb[0].mxu0 %v141
    %v354 = vpop.f32.mrb[0].mxu0
    %v355 = vadd.f32 %v59, %v354
    %v356 = vpop.f32.mrb[0].mxu0
    %357 = vmatprep.mubr.f32.mxu0 0.0
    %358 = vmatmul.mubr.f32.gmra.mrb[0].mxu0 %v144
    %v359 = vpop.f32.mrb[0].mxu0
    %v360 = vadd.f32 %v59, %v359
    %v361 = vpop.f32.mrb[0].mxu0
    %362 = vmatprep.mubr.f32.mxu0 0.0
    %363 = vmatmul.mubr.f32.gmra.mrb[0].mxu0 %v147
    %v364 = vpop.f32.mrb[0].mxu0
    %v365 = vadd.f32 %v59, %v364
    %v366 = vpop.f32.mrb[0].mxu0
    %367 = vmatprep.mubr.f32.mxu0 0.0
    %368 = vmatmul.mubr.f32.gmra.mrb[0].mxu0 %v150
    %v369 = vpop.f32.mrb[0].mxu0
    %v370 = vadd.f32 %v59, %v369
    %v371 = vpop.f32.mrb[0].mxu0
    %372 = vmatprep.mubr.f32.mxu0 0.0
    %373 = vmatmul.mubr.f32.gmra.mrb[0].mxu0 %v153
    %v374 = vpop.f32.mrb[0].mxu0
    %v375 = vadd.f32 %v59, %v374
    %v376 = vpop.f32.mrb[0].mxu0
    %377 = vmatprep.mubr.f32.mxu0 0.0
    %378 = vmatmul.mubr.f32.gmra.mrb[0].mxu0 %v156
    %v379 = vpop.f32.mrb[0].mxu0
    %v380 = vadd.f32 %v59, %v379
    %v381 = vpop.f32.mrb[0].mxu0
    %382 = vdwg.mxu0
    %383 = vst [vmem:[#allocation2] sm:$0xff] %v225
    %384 = vst [vmem:[#allocation2 + $0x8] sm:$0xff] %v230
    %385 = vst [vmem:[#allocation2 + $0x10] sm:$0xff] %v235
    %386 = vst [vmem:[#allocation2 + $0x18] sm:$0xff] %v240
    %387 = vst [vmem:[#allocation2 + $0x20] sm:$0xff] %v245
    %388 = vst [vmem:[#allocation2 + $0x28] sm:$0xff] %v250
    %389 = vst [vmem:[#allocation2 + $0x30] sm:$0xff] %v255
    %390 = vst [vmem:[#allocation2 + $0x38] sm:$0xff] %v260
    %391 = vst [vmem:[#allocation2 + $0x40] sm:$0xff] %v265
    %392 = vst [vmem:[#allocation2 + $0x48] sm:$0xff] %v270
    %393 = vst [vmem:[#allocation2 + $0x50] sm:$0xff] %v275
    %394 = vst [vmem:[#allocation2 + $0x58] sm:$0xff] %v280
    %395 = vst [vmem:[#allocation2 + $0x60] sm:$0xff] %v285
    %396 = vst [vmem:[#allocation2 + $0x68] sm:$0xff] %v290
    %397 = vst [vmem:[#allocation2 + $0x70] sm:$0xff] %v295
    %398 = vst [vmem:[#allocation2 + $0x78] sm:$0xff] %v300
    %399 = vst [vmem:[#allocation2 + $0x80] sm:$0xff] %v305
    %400 = vst [vmem:[#allocation2 + $0x88] sm:$0xff] %v310
    %401 = vst [vmem:[#allocation2 + $0x90] sm:$0xff] %v315
    %402 = vst [vmem:[#allocation2 + $0x98] sm:$0xff] %v320
    %403 = vst [vmem:[#allocation2 + $0xa0] sm:$0xff] %v325
    %404 = vst [vmem:[#allocation2 + $0xa8] sm:$0xff] %v330
    %405 = vst [vmem:[#allocation2 + $0xb0] sm:$0xff] %v335
    %406 = vst [vmem:[#allocation2 + $0xb8] sm:$0xff] %v340
    %407 = vst [vmem:[#allocation2 + $0xc0] sm:$0xff] %v345
    %408 = vst [vmem:[#allocation2 + $0xc8] sm:$0xff] %v350
    %409 = vst [vmem:[#allocation2 + $0xd0] sm:$0xff] %v355
    %410 = vst [vmem:[#allocation2 + $0xd8] sm:$0xff] %v360
    %411 = vst [vmem:[#allocation2 + $0xe0] sm:$0xff] %v365
    %412 = vst [vmem:[#allocation2 + $0xe8] sm:$0xff] %v370
    %413 = vst [vmem:[#allocation2 + $0xf0] sm:$0xff] %v375
    %414 = vst [vmem:[#allocation2 + $0xf8] sm:$0xff] %v380
    // Predicated region
    $region14: #{_forward_impl.1} parent=1 // pred_check
      _
    $region15: #{_forward_impl.1} parent=1 // pred_check_branch
      %416 = sbr.rel (0) target = $region17
    $region16: #{_forward_impl.1} parent=1 // pred_region
      // Predicated region
      $region18: #{_forward_impl.1} parent=16 // pred_check
        _
      $region19: #{_forward_impl.1} parent=16 // pred_check_branch
        %418 = sbr.rel (0) target = $region21
      $region20: #{_forward_impl.1} parent=16 // pred_region
        // Predicated region
        $region22: #{_forward_impl.1} parent=20 // pred_check
          _
        $region23: #{_forward_impl.1} parent=20 // pred_check_branch
          %420 = sbr.rel (0) target = $region25
        $region24: #{_forward_impl.1} parent=20 // pred_region
          // Predicated region
          $region37: #{_forward_impl.1} parent=24 // pred_check
            _
          $region38: #{_forward_impl.1} parent=24 // pred_check_branch
            %439 = sbr.rel (0) target = $region40
          $region39: #{_forward_impl.1} parent=24 // pred_region
            loop: start=0, step=1, limit=1
            $region41: #{_forward_impl.1} parent=39 // loop_pre_header
              _
            $region42: #{_forward_impl.1} parent=39 // loop_header
              %s441 = sphi 0, %s445
              %p442 = scmp.ge.s32.totalorder %s441, 1
              %s446 = sphi [#allocation2], [#allocation2]
              %s447 = sphi %s3, %s3
            $region43: #{_forward_impl.1} parent=39 // loop_header_branch
              %444 = sbr.rel (%p442) target = $region47
            $region44: #{_forward_impl.1} parent=39 // loop_body
              %v448 = vld [vmem:[%s446] sm:$0xff]
              %449 = vst [vmem:[%s447] sm:$0xff] %v448
              %v450 = vld [vmem:[%s446 + $0x8] sm:$0xff]
              %451 = vst [vmem:[%s447 + $0x8] sm:$0xff] %v450
              %v452 = vld [vmem:[%s446 + $0x10] sm:$0xff]
              %453 = vst [vmem:[%s447 + $0x10] sm:$0xff] %v452
            $region45: #{_forward_impl.1} parent=39 // loop_footer
              %s445 = sadd.s32 1, %s441
            $region46: #{_forward_impl.1} parent=39 // loop_footer_branch
              %440 = sbr.rel target = $region42
            $region47: #{_forward_impl.1} parent=39 // loop_exit
              _
          $region40: #{_forward_impl.1} parent=24 // pred_fallthru
            _
          // Predicated region
          $region48: #{_forward_impl.1} parent=24 // pred_check
            _
          $region49: #{_forward_impl.1} parent=24 // pred_check_branch
            %455 = sbr.rel target = $region51
          $region50: #{_forward_impl.1} parent=24 // pred_region
            _
          $region51: #{_forward_impl.1} parent=24 // pred_fallthru
            _
        $region25: #{_forward_impl.1} parent=20 // pred_fallthru
          _
        // Predicated region
        $region26: #{_forward_impl.1} parent=20 // pred_check
          _
        $region27: #{_forward_impl.1} parent=20 // pred_check_branch
          %422 = sbr.rel target = $region29
        $region28: #{_forward_impl.1} parent=20 // pred_region
          loop: start=0, step=1, limit=1
          $region30: #{_forward_impl.1} parent=28 // loop_pre_header
            _
          $region31: #{_forward_impl.1} parent=28 // loop_header
            %s425 = sphi 0, %s429
            %p426 = scmp.ge.s32.totalorder %s425, 1
            %s430 = sphi [#allocation2], [#allocation2]
            %s431 = sphi %s3, %s3
          $region32: #{_forward_impl.1} parent=28 // loop_header_branch
            %428 = sbr.rel (%p426) target = $region36
          $region33: #{_forward_impl.1} parent=28 // loop_body
            %v432 = vld [vmem:[%s430] sm:$0xff]
            %433 = vst [vmem:[%s431] sm:$0xff] %v432
            %v434 = vld [vmem:[%s430 + $0x8] sm:$0xff]
            %435 = vst [vmem:[%s431 + $0x8] sm:$0xff] %v434
            %v436 = vld [vmem:[%s430 + $0x10] sm:$0xff]
            %437 = vst [vmem:[%s431 + $0x10] sm:$0xff] %v436
          $region34: #{_forward_impl.1} parent=28 // loop_footer
            %s429 = sadd.s32 1, %s425
          $region35: #{_forward_impl.1} parent=28 // loop_footer_branch
            %424 = sbr.rel target = $region31
          $region36: #{_forward_impl.1} parent=28 // loop_exit
            _
        $region29: #{_forward_impl.1} parent=20 // pred_fallthru
          _
      $region21: #{_forward_impl.1} parent=16 // pred_fallthru
        _
      %456 = vnop
    $region17: #{_forward_impl.1} parent=1 // pred_fallthru
      _
    // Predicated region
    $region52: #{_forward_impl.1} parent=1 // pred_check
      _
    $region53: #{_forward_impl.1} parent=1 // pred_check_branch
      %458 = sbr.rel (0) target = $region55
    $region54: #{_forward_impl.1} parent=1 // pred_region
      _
    $region55: #{_forward_impl.1} parent=1 // pred_fallthru
      _

</llo_original>
